<compile_context>
chip_gen: v6e
topology: v6e:2x2x1
jax: 0.10.0
libtpu: 0.0.40
codegen_flags: <defaults>
</compile_context>

<pallas_src>
import jax
import jax.numpy as jnp
from jax.experimental import pallas as pl
from jax.experimental.pallas import tpu as pltpu


def _axpy_kernel(a_ref, x_ref, y_ref, o_ref):
    # a_ref: (TR, 1) per-row scale; x_ref/y_ref/o_ref: (TR, TC)
    o_ref[...] = (a_ref[...] * x_ref[...] + y_ref[...]).astype(o_ref.dtype)


def _round_up(v, m):
    return ((v + m - 1) // m) * m


def axpy(a, x, y):
    """a: (N, C, 1, 1); x, y: (N, C, H, W). Returns a * x + y, shape (N, C, H, W)."""
    N, C, H, W = x.shape
    assert a.shape == (N, C, 1, 1)
    assert y.shape == x.shape

    out_dtype = jnp.result_type(a.dtype, x.dtype, y.dtype)

    R = N * C
    L = H * W

    # Tiny feature maps: lane width < 128 would force masked partial stores;
    # plain XLA elementwise is at least as good here.
    if R == 0 or L == 0 or L < 128:
        return (a * x + y).astype(out_dtype)

    x2 = x.reshape(R, L)
    y2 = y.reshape(R, L)
    a2 = a.reshape(R, 1)

    x_it = jnp.dtype(x.dtype).itemsize
    y_it = jnp.dtype(y.dtype).itemsize
    o_it = jnp.dtype(out_dtype).itemsize
    a_it = jnp.dtype(a.dtype).itemsize
    stream_it = x_it + y_it + o_it

    # dtype-aware sublane packing: 8 rows for 4-byte, 16 for 2-byte, 32 for 1-byte.
    min_item = min(x_it, y_it, o_it)
    sub = max(8, 32 // max(min_item, 1))

    # Generation-aware VMEM budget (v5e/v6e 128 MiB physical, v7x 64 MiB),
    # with headroom for compiler scratch.
    try:
        info = pltpu.get_tpu_info()
        vmem_cap = int(getattr(info, "vmem_capacity_bytes", 64 * 1024 * 1024))
    except Exception:
        vmem_cap = 64 * 1024 * 1024
    vmem_budget = min(int(vmem_cap * 0.75), 96 * 1024 * 1024)

    # Per-tile byte cap for the three x/y/out streams: target ~4 MiB/stream,
    # never more than half the budget (double buffering), minus `a` overhead.
    tile_cap = min(12 * 1024 * 1024, vmem_budget // 2 - sub * 128 * a_it)

    # Prefer full-row tiles (tc = L): each tile is a single contiguous HBM region.
    if L * stream_it * sub <= tile_cap:
        tc = L
        tr_max = (tile_cap // (L * stream_it)) // sub * sub
    else:
        tc = max(128, min(_round_up(L, 128),
                          (tile_cap // (sub * stream_it)) // 128 * 128))
        tr_max = (tile_cap // (tc * stream_it)) // sub * sub
    tr_max = max(tr_max, sub)

    if R <= sub:
        tr = R  # full extent (legal even if not a multiple of 8)
    else:
        # Keep >= 2 row blocks so both v7x TensorCores get work.
        half_rows = _round_up(pl.cdiv(R, 2), sub)
        tr = max(sub, min(tr_max, half_rows, _round_up(R, sub)))

    grid_r = pl.cdiv(R, tr)
    if tc == L:
        grid = (grid_r,)
        in_specs = [
            pl.BlockSpec((tr, 1), lambda i: (i, 0)),   # a (per-row scale)
            pl.BlockSpec((tr, tc), lambda i: (i, 0)),  # x
            pl.BlockSpec((tr, tc), lambda i: (i, 0)),  # y
        ]
        out_specs = pl.BlockSpec((tr, tc), lambda i: (i, 0))
        dim_sem = ("parallel",)
    else:
        grid_c = pl.cdiv(L, tc)
        grid = (grid_r, grid_c)
        in_specs = [
            # `a`: block index constant along inner axis j -> no re-DMA per step.
            pl.BlockSpec((tr, 1), lambda i, j: (i, 0)),
            pl.BlockSpec((tr, tc), lambda i, j: (i, j)),  # x
            pl.BlockSpec((tr, tc), lambda i, j: (i, j)),  # y
        ]
        out_specs = pl.BlockSpec((tr, tc), lambda i, j: (i, j))
        dim_sem = ("parallel", "parallel")

    # VMEM need: double-buffered x/y/out tiles + `a` (padded to 128 lanes).
    vmem_need = 2 * (tr * tc * stream_it) + 2 * (_round_up(tr, sub) * 128 * a_it)
    vmem_limit = int(min(max(2 * vmem_need, 32 * 1024 * 1024), vmem_budget))

    cost = pl.CostEstimate(
        flops=2 * R * L,
        transcendentals=0,
        bytes_accessed=R * L * stream_it + R * a_it,
    )

    out2 = pl.pallas_call(
        _axpy_kernel,
        out_shape=jax.ShapeDtypeStruct((R, L), out_dtype),
        grid_spec=pltpu.PrefetchScalarGridSpec(
            num_scalar_prefetch=0,
            grid=grid,
            in_specs=in_specs,
            out_specs=out_specs,
        ),
        compiler_params=pltpu.CompilerParams(
            dimension_semantics=dim_sem,
            vmem_limit_bytes=vmem_limit,
        ),
        cost_estimate=cost,
    )(a2, x2, y2)

    return out2.reshape(N, C, H, W)


if __name__ == "__main__":
    key = jax.random.PRNGKey(0)
    ka, kx, ky = jax.random.split(key, 3)

    N, C, H, W = 2, 4, 16, 16
    a = jax.random.normal(ka, (N, C, 1, 1), dtype=jnp.float32)
    x = jax.random.normal(kx, (N, C, H, W), dtype=jnp.float32)
    y = jax.random.normal(ky, (N, C, H, W), dtype=jnp.float32)

    out = axpy(a, x, y)
    out = jax.block_until_ready(out)

    ref = a * x + y
    assert out.shape == ref.shape and out.dtype == ref.dtype
    assert jnp.allclose(out, ref, atol=1e-6, rtol=1e-6)

    print("KERNEL_OK")
</pallas_src>

<mosaic_0001>
module attributes {stable_mosaic.version = 11 : i64} {
  func.func @_axpy_kernel(%arg0: i32, %arg1: memref<8x1xf32, #tpu.memory_space<vmem>>, %arg2: memref<8x256xf32, #tpu.memory_space<vmem>>, %arg3: memref<8x256xf32, #tpu.memory_space<vmem>>, %arg4: memref<8x256xf32, #tpu.memory_space<vmem>>) attributes {dimension_semantics = [#tpu.dimension_semantics<parallel>], iteration_bounds = array<i64: 1>, scalar_prefetch = 0 : i64, scratch_operands = 0 : i64, tpu.core_type = #tpu.core_type<tc>, window_params = [{transform_indices = @transform_0, window_bounds = array<i64: 8, 1>}, {transform_indices = @transform_1, window_bounds = array<i64: 8, 256>}, {transform_indices = @transform_2, window_bounds = array<i64: 8, 256>}, {transform_indices = @transform_3, window_bounds = array<i64: 8, 256>}]} {
    %c0 = arith.constant 0 : index
    %c0_0 = arith.constant 0 : index
    %0 = vector.load %arg1[%c0, %c0_0] : memref<8x1xf32, #tpu.memory_space<vmem>>, vector<8x1xf32>
    %c0_1 = arith.constant 0 : index
    %c0_2 = arith.constant 0 : index
    %1 = vector.load %arg2[%c0_1, %c0_2] : memref<8x256xf32, #tpu.memory_space<vmem>>, vector<8x256xf32>
    %2 = vector.broadcast %0 : vector<8x1xf32> to vector<8x256xf32>
    %3 = arith.mulf %2, %1 : vector<8x256xf32>
    %c0_3 = arith.constant 0 : index
    %c0_4 = arith.constant 0 : index
    %4 = vector.load %arg3[%c0_3, %c0_4] : memref<8x256xf32, #tpu.memory_space<vmem>>, vector<8x256xf32>
    %5 = arith.addf %3, %4 : vector<8x256xf32>
    %c0_5 = arith.constant 0 : index
    %c0_6 = arith.constant 0 : index
    %6 = vector.load %arg4[%c0_5, %c0_6] : memref<8x256xf32, #tpu.memory_space<vmem>>, vector<8x256xf32>
    tpu.vector_store %arg4[%c0_5, %c0_6], %5 {strides = array<i32>} : memref<8x256xf32, #tpu.memory_space<vmem>>, vector<8x256xf32>,
    return
  }
  func.func @transform_0(%arg0: i32) -> (i32, i32) {
    %c0_i32 = arith.constant 0 : i32
    %c0_i32_0 = arith.constant 0 : i32
    return %arg0, %c0_i32 : i32, i32
  }
  func.func @transform_1(%arg0: i32) -> (i32, i32) {
    %c0_i32 = arith.constant 0 : i32
    %c0_i32_0 = arith.constant 0 : i32
    return %arg0, %c0_i32 : i32, i32
  }
  func.func @transform_2(%arg0: i32) -> (i32, i32) {
    %c0_i32 = arith.constant 0 : i32
    %c0_i32_0 = arith.constant 0 : i32
    return %arg0, %c0_i32 : i32, i32
  }
  func.func @transform_3(%arg0: i32) -> (i32, i32) {
    %c0_i32 = arith.constant 0 : i32
    %c0_i32_0 = arith.constant 0 : i32
    return %arg0, %c0_i32 : i32, i32
  }
}

</mosaic_0001>

<llo_original>
// kernel: tpu_custom_call.1
$region0: #{tpu_custom_call.1}
  #allocation0 [shape = 'u32[]', space=smem, size = 0x4, offset = 0x4, fixed_abs, tag = 'smem constant byte address 0x4 - core index']
  #allocation1 [shape = 'u32[144,128]{1,0:T(1,128)}', space=vmem, size = 0x12000, scoped, tag = 'internal scratch']
  %s0 = inlined_call_operand.vmem [shape: f32[8,1], index: 0, kind: input, shape index: {}]
  %s1 = inlined_call_operand.hbm [shape: f32[8,256], index: 1, kind: input, shape index: {}]
  %s2 = inlined_call_operand.hbm [shape: f32[8,256], index: 2, kind: input, shape index: {}]
  %s3 = inlined_call_operand.hbm [shape: f32[8,256], index: 3, kind: output, shape index: {}]
  %s4 = sld [smem:[#allocation0]]
  $region30: #{tpu_custom_call.1} parent=0
    _
  %s6 = ssub.s32 1, %s4
  %s7 = scalar_select 0, %s6, %s4
  $region1: #{tpu_custom_call.1} parent=0
    #allocation2 [shape = 'u8[8192]{0}', space=vmem, size = 0x2000, scoped, tag = 'input window, operand 1, single buffered']
    #allocation3 [shape = 's32[1]{0}', space=sflag, size = 0x4, scoped, tag = 'scoped memory for tpu_custom_call.1']
    #allocation4 [shape = 's32[1]{0}', space=sflag, size = 0x4, scoped, tag = 'scoped memory for tpu_custom_call.1']
    #allocation5 [shape = 'u8[8192]{0}', space=vmem, size = 0x2000, scoped, tag = 'input window, operand 2, single buffered']
    #allocation6 [shape = 's32[1]{0}', space=sflag, size = 0x4, scoped, tag = 'scoped memory for tpu_custom_call.1']
    #allocation7 [shape = 'u8[8192]{0}', space=vmem, size = 0x2000, scoped, tag = 'output window, operand 0, single buffered']
    %8 = vsyncpa [#allocation3], 0
    %9 = vsyncpa [#allocation6], 0
    %10 = vsyncpa [#allocation4], 0
    // Predicated region
    $region2: #{tpu_custom_call.1} parent=1 // pred_check
      _
    $region3: #{tpu_custom_call.1} parent=1 // pred_check_branch
      %12 = sbr.rel (0) target = $region5
    $region4: #{tpu_custom_call.1} parent=1 // pred_region
      _
    $region5: #{tpu_custom_call.1} parent=1 // pred_fallthru
      _
    // Predicated region
    $region6: #{tpu_custom_call.1} parent=1 // pred_check
      _
    $region7: #{tpu_custom_call.1} parent=1 // pred_check_branch
      %14 = sbr.rel (0) target = $region9
    $region8: #{tpu_custom_call.1} parent=1 // pred_region
      %s16 = ssub.s32 256, 256
      %17 = vsyncadd [#allocation3], %s16
      %s19 = sshll.u32 [#allocation2], 4
      %s20 = int_to_ptr.vmem [resolvable:$true] %s19
      %22 = dma.hbm_to_vmem [thread:$0]  %s1, 256, %s20, [#allocation3]
    $region9: #{tpu_custom_call.1} parent=1 // pred_fallthru
      _
    // Predicated region
    $region10: #{tpu_custom_call.1} parent=1 // pred_check
      _
    $region11: #{tpu_custom_call.1} parent=1 // pred_check_branch
      %24 = sbr.rel (0) target = $region13
    $region12: #{tpu_custom_call.1} parent=1 // pred_region
      %s26 = ssub.s32 256, 256
      %27 = vsyncadd [#allocation6], %s26
      %s29 = sshll.u32 [#allocation5], 4
      %s30 = int_to_ptr.vmem [resolvable:$true] %s29
      %32 = dma.hbm_to_vmem [thread:$0]  %s2, 256, %s30, [#allocation6]
    $region13: #{tpu_custom_call.1} parent=1 // pred_fallthru
      _
    // Predicated region
    $region14: #{tpu_custom_call.1} parent=1 // pred_check
      _
    $region15: #{tpu_custom_call.1} parent=1 // pred_check_branch
      %34 = sbr.rel (0) target = $region17
    $region16: #{tpu_custom_call.1} parent=1 // pred_region
      %35 = dma.done [#allocation3], 256
    $region17: #{tpu_custom_call.1} parent=1 // pred_fallthru
      _
    // Predicated region
    $region18: #{tpu_custom_call.1} parent=1 // pred_check
      _
    $region19: #{tpu_custom_call.1} parent=1 // pred_check_branch
      %37 = sbr.rel (0) target = $region21
    $region20: #{tpu_custom_call.1} parent=1 // pred_region
      %38 = dma.done [#allocation6], 256
    $region21: #{tpu_custom_call.1} parent=1 // pred_fallthru
      _
    %v39 = vld [vmem:[%s0] sm:$0xff]
    %v40 = vld [vmem:[#allocation2] sm:$0xff]
    %v41 = vld [vmem:[#allocation2 + $0x8] sm:$0xff]
    %43 = vset.pattern.permute.xlu0 0
    %44 = vperm.xlu0 %43, %v39
    %v45 = vpop.permute.xlu0 %44
    %v47 = vmul.f32 %v45, %v40
    %v48 = vmul.f32 %v45, %v41
    %v49 = vld [vmem:[#allocation5] sm:$0xff]
    %v50 = vld [vmem:[#allocation5 + $0x8] sm:$0xff]
    %v51 = vadd.f32 %v47, %v49
    %v52 = vadd.f32 %v48, %v50
    %53 = vst [vmem:[#allocation7] sm:$0xff] %v51
    %54 = vst [vmem:[#allocation7 + $0x8] sm:$0xff] %v52
    // Predicated region
    $region22: #{tpu_custom_call.1} parent=1 // pred_check
      _
    $region23: #{tpu_custom_call.1} parent=1 // pred_check_branch
      %56 = sbr.rel (0) target = $region25
    $region24: #{tpu_custom_call.1} parent=1 // pred_region
      %s58 = ssub.s32 256, 256
      %59 = vsyncadd [#allocation4], %s58
      %s61 = sshll.u32 [#allocation7], 4
      %s62 = int_to_ptr.vmem [resolvable:$true] %s61
      %64 = dma.vmem_to_hbm [thread:$0]  %s62, 256, %s3, [#allocation4]
    $region25: #{tpu_custom_call.1} parent=1 // pred_fallthru
      _
    // Predicated region
    $region26: #{tpu_custom_call.1} parent=1 // pred_check
      _
    $region27: #{tpu_custom_call.1} parent=1 // pred_check_branch
      %66 = sbr.rel (0) target = $region29
    $region28: #{tpu_custom_call.1} parent=1 // pred_region
      %67 = dma.done [#allocation4], 256
    $region29: #{tpu_custom_call.1} parent=1 // pred_fallthru
      _
    %68 = vsyncpa [#allocation3], 1
    %69 = vsyncpa [#allocation6], 1
    %70 = vsyncpa [#allocation4], 1

</llo_original>
